<compile_context>
chip_gen: v7x
topology: tpu7x:2x2x1
jax: 0.10.0
libtpu: 0.0.40
codegen_flags: <defaults>
</compile_context>

<pallas_src>
import jax
import jax.numpy as jnp
import numpy as np
from jax.experimental import pallas as pl
from jax.experimental.pallas import tpu as pltpu


# -----------------------------------------------------------------------------
# Pallas kernel: per-tile outer-product expansion  out = A_aug @ coordsT_aug
#   a_ref:       [3B, C+1]  f32, tile-invariant (resident)
#   coordsT_ref: [C+1, TN]  f32, coords^T tile with a trailing ones row
#   out_ref:     [3B, TN]   packed output slab (channel-major on sublanes)
# Implemented as C+1 unrolled broadcast FMAs (pure VPU; review opt. 3/4).
# -----------------------------------------------------------------------------
def pod_tile_kernel(a_ref, coordsT_ref, out_ref):
    A = a_ref[...]            # [3B, C+1]
    x = coordsT_ref[...]      # [C+1, TN]
    c1 = x.shape[0]
    acc = A[:, 0:1] * x[0:1, :]                      # [3B, TN]
    for j in range(1, c1):                           # static unroll (C+1 small)
        acc = acc + A[:, j:j + 1] * x[j:j + 1, :]
    out_ref[...] = acc.astype(out_ref.dtype)


# -----------------------------------------------------------------------------
# Run-once branch MLPs (hoisted out of the kernel; plain JAX, f32 HIGHEST)
# -----------------------------------------------------------------------------
def _branch_forward(noise, w1, b1, w2, b2, w3, b3, w4, b4, w5, b5):
    hp = jax.lax.Precision.HIGHEST
    h = jnp.broadcast_to(noise[None], (3,) + noise.shape)          # [3, B, F]
    for (W, b) in ((w1, b1), (w2, b2), (w3, b3), (w4, b4)):
        h = jnp.tanh(jnp.einsum('cbi,cio->cbo', h, W, precision=hp) + b)
    return jnp.einsum('cbi,cio->cbo', h, w5, precision=hp) + b5    # [3, B, p]


# -----------------------------------------------------------------------------
# Wrapper: branch hoist + algebraic fusion + lane tiling of N
# -----------------------------------------------------------------------------
def pod_deeponet2_forward(noise, coords, params, *, tile_n=8192):
    (w1, b1, w2, b2, w3, b3, w4, b4, w5, b5, wt, bt, wmT, bmT) = params
    B = noise.shape[0]
    N, C = coords.shape
    p = w5.shape[2]
    f32 = jnp.float32
    hp = jax.lax.Precision.HIGHEST

    # --- branch nets (run once per call) ---
    ob = _branch_forward(noise.astype(f32),
                         w1.astype(f32), b1.astype(f32), w2.astype(f32), b2.astype(f32),
                         w3.astype(f32), b3.astype(f32), w4.astype(f32), b4.astype(f32),
                         w5.astype(f32), b5.astype(f32))                      # [3, B, p]

    # --- fold ob into the trunk weights (tile-invariant precompute, f32) ---
    #   A[c,b,j] = ob[c,b,:]·wt[j, c*p:(c+1)*p] + wmT[c,j]
    #   s[c,b]   = ob[c,b,:]·bt[0, c*p:(c+1)*p] + bmT[c,0]
    wt_r = wt.astype(f32).reshape(C, 3, p)          # wt[j, c*p+k] -> wt_r[j, c, k]
    bt_r = bt.astype(f32).reshape(3, p)
    A = jnp.einsum('cbk,jck->cbj', ob, wt_r, precision=hp) + wmT.astype(f32)[:, None, :]
    s = jnp.einsum('cbk,ck->cb', ob, bt_r, precision=hp) + bmT.astype(f32)    # [3, B]
    A_aug = jnp.concatenate([A, s[..., None]], axis=-1).reshape(3 * B, C + 1)

    # --- lane tiling of N: 128-multiple tiles, minimal padding ---
    cap = max(128, (int(tile_n) // 128) * 128)
    n128 = pl.cdiv(N, 128) * 128
    TN = min(cap, n128)
    n_pad = pl.cdiv(N, TN) * TN
    num_tiles = n_pad // TN

    # coords^T with a trailing ones row (carries the folded bias), zero-padded.
    coordsT = jnp.zeros((C + 1, n_pad), f32)
    coordsT = coordsT.at[:C, :N].set(coords.T.astype(f32))
    coordsT = coordsT.at[C, :N].set(1.0)

    out = pl.pallas_call(
        pod_tile_kernel,
        out_shape=jax.ShapeDtypeStruct((3 * B, n_pad), f32),
        grid_spec=pltpu.PrefetchScalarGridSpec(
            num_scalar_prefetch=0,
            grid=(num_tiles,),
            in_specs=[
                pl.BlockSpec((3 * B, C + 1), lambda i: (0, 0)),   # A_aug (resident)
                pl.BlockSpec((C + 1, TN), lambda i: (0, i)),      # coords^T tile
            ],
            out_specs=pl.BlockSpec((3 * B, TN), lambda i: (0, i)),
        ),
        compiler_params=pltpu.CompilerParams(
            # No scratch / cross-tile dependency -> N axis can shard across TCs.
            dimension_semantics=("parallel",),
            vmem_limit_bytes=32 * 1024 * 1024,
        ),
    )(A_aug, coordsT)

    # [3B, n_pad] -> [3, B, N]; the slice is a no-op when N % TN == 0.
    out = out.reshape(3, B, n_pad)[:, :, :N]
    # Flatten to [B*N] matching torch repeat_interleave / tile ordering.
    return out[0].reshape(B * N), out[1].reshape(B * N), out[2].reshape(B * N)


# -----------------------------------------------------------------------------
# Pure-JAX reference (f32, HIGHEST precision), mirrors the PyTorch module
# -----------------------------------------------------------------------------
def reference_forward(noise, coords, params):
    (w1, b1, w2, b2, w3, b3, w4, b4, w5, b5, wt, bt, wmT, bmT) = params
    hp = jax.lax.Precision.HIGHEST
    out_t = jnp.dot(coords, wt, precision=hp) + bt               # [N, 3p]
    out_bias = jnp.dot(coords, wmT.T, precision=hp) + bmT.T      # [N, 3]
    p = w5.shape[2]
    results = []
    for c in range(3):
        h = noise
        for (W, b) in ((w1[c], b1[c]), (w2[c], b2[c]), (w3[c], b3[c]), (w4[c], b4[c])):
            h = jnp.tanh(jnp.dot(h, W, precision=hp) + b)
        out_b = jnp.dot(h, w5[c], precision=hp) + b5[c]          # [B, p]
        t_c = out_t[:, c * p:(c + 1) * p]                        # [N, p]
        g = jnp.dot(out_b, t_c.T, precision=hp) + out_bias[:, c][None, :]
        results.append(g.reshape(-1))
    return tuple(results)


# -----------------------------------------------------------------------------
# Deterministic parameter init + run
# -----------------------------------------------------------------------------
def make_params(key, noise_feature, p, coord_dim, width=32):
    ks = jax.random.split(key, 14)
    s = 0.2  # small scale to keep tanh in its active region

    def rnd(k, shape):
        return (s * jax.random.normal(k, shape)).astype(jnp.float32)

    w1 = rnd(ks[0], (3, noise_feature, width)); b1 = rnd(ks[1], (3, 1, width))
    w2 = rnd(ks[2], (3, width, width));         b2 = rnd(ks[3], (3, 1, width))
    w3 = rnd(ks[4], (3, width, width));         b3 = rnd(ks[5], (3, 1, width))
    w4 = rnd(ks[6], (3, width, width));         b4 = rnd(ks[7], (3, 1, width))
    w5 = rnd(ks[8], (3, width, p));             b5 = rnd(ks[9], (3, 1, p))
    # trunk_components surrogate: Linear(coord_dim -> 3p)
    wt = rnd(ks[10], (coord_dim, 3 * p));       bt = rnd(ks[11], (1, 3 * p))
    # trunk_means surrogate: Linear(coord_dim -> 3), stored transposed
    wmT = rnd(ks[12], (3, coord_dim));          bmT = rnd(ks[13], (3, 1))
    return (w1, b1, w2, b2, w3, b3, w4, b4, w5, b5, wt, bt, wmT, bmT)


if __name__ == "__main__":
    key = jax.random.PRNGKey(0)
    fwd = jax.jit(pod_deeponet2_forward, static_argnames=("tile_n",))

    configs = [
        # (B, noise_feature, p, coord_dim, N, width, tile_n)
        dict(B=2, noise_feature=8, p=8, coord_dim=2, N=16,  width=32, tile_n=8192),  # single tile
        dict(B=4, noise_feature=8, p=8, coord_dim=2, N=300, width=32, tile_n=128),   # multi-tile + padded tail
        dict(B=2, noise_feature=8, p=8, coord_dim=3, N=256, width=32, tile_n=8192),  # N % 128 == 0, no-copy tail
    ]
    for cfg in configs:
        key, k_noise, k_coords, k_params = jax.random.split(key, 4)
        noise = jax.random.normal(k_noise, (cfg["B"], cfg["noise_feature"]),
                                  dtype=jnp.float32)
        coords = jax.random.uniform(k_coords, (cfg["N"], cfg["coord_dim"]),
                                    dtype=jnp.float32)
        params = make_params(k_params, cfg["noise_feature"], cfg["p"],
                             cfg["coord_dim"], cfg["width"])

        g_e, g_x, g_y = fwd(noise, coords, params, tile_n=cfg["tile_n"])
        jax.block_until_ready((g_e, g_x, g_y))

        r_e, r_x, r_y = reference_forward(noise, coords, params)
        for got, ref in ((g_e, r_e), (g_x, r_x), (g_y, r_y)):
            assert got.shape == (cfg["B"] * cfg["N"],)
            # Everything is f32 (HIGHEST) now; only summation reassociation differs.
            np.testing.assert_allclose(np.asarray(got), np.asarray(ref),
                                       rtol=1e-3, atol=1e-5)

    print("KERNEL_OK")
</pallas_src>

<mosaic_0001>
module attributes {stable_mosaic.version = 11 : i64} {
  func.func @pod_tile_kernel(%arg0: i32, %arg1: memref<6x3xf32, #tpu.memory_space<vmem>>, %arg2: memref<3x128xf32, #tpu.memory_space<vmem>>, %arg3: memref<6x128xf32, #tpu.memory_space<vmem>>) attributes {dimension_semantics = [#tpu.dimension_semantics<parallel>], iteration_bounds = array<i64: 1>, scalar_prefetch = 0 : i64, scratch_operands = 0 : i64, tpu.core_type = #tpu.core_type<tc>, window_params = [{pipeline_mode = #tpu.pipeline_mode<synchronous>, transform_indices = @transform_0, window_bounds = array<i64: 6, 3>}, {transform_indices = @transform_1, window_bounds = array<i64: 3, 128>}, {transform_indices = @transform_2, window_bounds = array<i64: 6, 128>}]} {
    %c0 = arith.constant 0 : index
    %c0_0 = arith.constant 0 : index
    %0 = vector.load %arg1[%c0, %c0_0] : memref<6x3xf32, #tpu.memory_space<vmem>>, vector<6x3xf32>
    %c0_1 = arith.constant 0 : index
    %c0_2 = arith.constant 0 : index
    %1 = vector.load %arg2[%c0_1, %c0_2] : memref<3x128xf32, #tpu.memory_space<vmem>>, vector<3x128xf32>
    %2 = vector.extract_strided_slice %0 {offsets = [0, 0], sizes = [6, 1], strides = [1, 1]} : vector<6x3xf32> to vector<6x1xf32>
    %3 = vector.extract_strided_slice %1 {offsets = [0, 0], sizes = [1, 128], strides = [1, 1]} : vector<3x128xf32> to vector<1x128xf32>
    %4 = vector.broadcast %2 : vector<6x1xf32> to vector<6x128xf32>
    %5 = vector.broadcast %3 : vector<1x128xf32> to vector<6x128xf32>
    %6 = arith.mulf %4, %5 : vector<6x128xf32>
    %7 = vector.extract_strided_slice %0 {offsets = [0, 1], sizes = [6, 1], strides = [1, 1]} : vector<6x3xf32> to vector<6x1xf32>
    %8 = vector.extract_strided_slice %1 {offsets = [1, 0], sizes = [1, 128], strides = [1, 1]} : vector<3x128xf32> to vector<1x128xf32>
    %9 = vector.broadcast %7 : vector<6x1xf32> to vector<6x128xf32>
    %10 = vector.broadcast %8 : vector<1x128xf32> to vector<6x128xf32>
    %11 = arith.mulf %9, %10 : vector<6x128xf32>
    %12 = arith.addf %6, %11 : vector<6x128xf32>
    %13 = vector.extract_strided_slice %0 {offsets = [0, 2], sizes = [6, 1], strides = [1, 1]} : vector<6x3xf32> to vector<6x1xf32>
    %14 = vector.extract_strided_slice %1 {offsets = [2, 0], sizes = [1, 128], strides = [1, 1]} : vector<3x128xf32> to vector<1x128xf32>
    %15 = vector.broadcast %13 : vector<6x1xf32> to vector<6x128xf32>
    %16 = vector.broadcast %14 : vector<1x128xf32> to vector<6x128xf32>
    %17 = arith.mulf %15, %16 : vector<6x128xf32>
    %18 = arith.addf %12, %17 : vector<6x128xf32>
    %c0_3 = arith.constant 0 : index
    %c0_4 = arith.constant 0 : index
    %19 = vector.load %arg3[%c0_3, %c0_4] : memref<6x128xf32, #tpu.memory_space<vmem>>, vector<6x128xf32>
    tpu.vector_store %arg3[%c0_3, %c0_4], %18 {strides = array<i32>} : memref<6x128xf32, #tpu.memory_space<vmem>>, vector<6x128xf32>,
    return
  }
  func.func @transform_0(%arg0: i32) -> (i32, i32) {
    %c0_i32 = arith.constant 0 : i32
    %c0_i32_0 = arith.constant 0 : i32
    %c0_i32_1 = arith.constant 0 : i32
    return %c0_i32, %c0_i32_0 : i32, i32
  }
  func.func @transform_1(%arg0: i32) -> (i32, i32) {
    %c0_i32 = arith.constant 0 : i32
    %c0_i32_0 = arith.constant 0 : i32
    return %c0_i32, %arg0 : i32, i32
  }
  func.func @transform_2(%arg0: i32) -> (i32, i32) {
    %c0_i32 = arith.constant 0 : i32
    %c0_i32_0 = arith.constant 0 : i32
    return %c0_i32, %arg0 : i32, i32
  }
}

</mosaic_0001>

<llo_original>
// kernel: squeeze.3
$region0: #{squeeze.3}
  %s0 = inlined_call_operand.vmem [shape: f32[1,2,16], index: 0, kind: input, shape index: {}]
  %s1 = inlined_call_operand.hbm [shape: f32[32], index: 1, kind: output, shape index: {}]
  $region1: #{squeeze.3} parent=0
    #allocation0 [shape = 'u8[512]{0}', space=vmem, size = 0x400, scoped, tag = 'operand span for operand 1']
    #allocation1 [shape = 's32[1]{0}', space=sflag, size = 0x4, scoped, tag = 'scoped memory for squeeze.3']
    #allocation2 [shape = 'u8[4096]{0}', space=vmem, size = 0x1000, scoped, tag = 'scoped mem for output reshape']
    #allocation3 [shape = 'u8[4096]{0}', space=vmem, size = 0x1000, scoped, tag = 'scoped mem for input reshape']
    %2 = vsyncpa [#allocation1], 0
    %s4 = sshllo.u32 0, 2
    %v5 = vld [vmem:[%s0] sm:%s4]
    %6 = vst [vmem:[#allocation3] sm:%s4] %v5
    %v7 = vld [vmem:[#allocation3] sm:$0x1]
    %vm8 = vcmask 130048
    %9 = vst.msk [vmem:[#allocation2] sm:$0x1] %vm8, %v7
    %s10 = scalar_lea.vmem [#allocation3], 1
    %v11 = vld [vmem:[%s10] sm:$0x1]
    %12 = vrot.lane.b32.xlu0 %v11, 16
    %v13 = vpop.permute.xlu0 %12
    %vm14 = vcmask 261248
    %15 = vst.msk [vmem:[#allocation2] sm:$0x1] %vm14, %v13
    %s17 = sshllo.u32 0, 1
    %v19 = vld [vmem:[#allocation2] sm:%s17]
    %s20 = sshllo.u32 0, 1
    %21 = vst [vmem:[#allocation0] sm:%s20] %v19
    %s23 = ssub.s32 16, 16
    %24 = vsyncadd [#allocation1], %s23
    %s26 = sshll.u32 [#allocation0], 4
    %s27 = int_to_ptr.vmem [resolvable:$true] %s26
    %29 = dma.vmem_to_hbm [thread:$0]  %s27, 16, %s1, [#allocation1]
    %30 = dma.done [#allocation1], 16
    %31 = vsyncpa [#allocation1], 1

// kernel: pod_deeponet2_forward.1
$region0: #{pod_deeponet2_forward.1}
  #allocation0 [shape = 'u32[]', space=smem, size = 0x4, offset = 0x4, fixed_abs, tag = 'smem constant byte address 0x4 - core index']
  #allocation1 [shape = 'u32[144,128]{1,0:T(1,128)}', space=vmem, size = 0x12000, scoped, tag = 'internal scratch']
  %s0 = inlined_call_operand.vmem [shape: f32[6,3], index: 0, kind: input, shape index: {}]
  %s1 = inlined_call_operand.vmem [shape: f32[3,128], index: 1, kind: input, shape index: {}]
  %s2 = inlined_call_operand.vmem [shape: f32[6,128], index: 2, kind: output, shape index: {}]
  %s3 = sld [smem:[#allocation0]]
  $region18: #{pod_deeponet2_forward.1} parent=0
    _
  %s5 = ssub.s32 1, %s3
  %s6 = scalar_select 0, %s5, %s3
  // Predicated region
  $region2: #{pod_deeponet2_forward.1} parent=0 // pred_check
    _
  $region3: #{pod_deeponet2_forward.1} parent=0 // pred_check_branch
    %8 = sbr.rel (0) target = $region5
  $region4: #{pod_deeponet2_forward.1} parent=0 // pred_region
    _
  $region5: #{pod_deeponet2_forward.1} parent=0 // pred_fallthru
    _
  // Predicated region
  $region6: #{pod_deeponet2_forward.1} parent=0 // pred_check
    _
  $region7: #{pod_deeponet2_forward.1} parent=0 // pred_check_branch
    %10 = sbr.rel (0) target = $region9
  $region8: #{pod_deeponet2_forward.1} parent=0 // pred_region
    _
  $region9: #{pod_deeponet2_forward.1} parent=0 // pred_fallthru
    _
  %v11 = vld [vmem:[%s0] sm:$0x3f]
  %v12 = vld [vmem:[%s1] sm:$0x7]
  %14 = vset.pattern.permute.xlu0 0
  %15 = vperm.xlu0 %14, %v11
  %v16 = vpop.permute.xlu0 %15
  %v18 = vlaneseq
  %v19 = vshrl.u32 %v18, 7
  %v20 = vsub.s32 0, %v19
  %v21 = vrot.slane %v12, %v20
  %v22 = vmul.f32 %v16, %v21
  %23 = vset.pattern.permute.xlu0 1
  %24 = vperm.xlu0 %23, %v11
  %v25 = vpop.permute.xlu0 %24
  %v27 = vlaneseq
  %v28 = vshrl.u32 %v27, 7
  %v29 = vsub.s32 1, %v28
  %v30 = vrot.slane %v12, %v29
  %v31 = vmul.f32 %v25, %v30
  %v32 = vadd.f32 %v22, %v31
  %33 = vset.pattern.permute.xlu0 2
  %34 = vperm.xlu0 %33, %v11
  %v35 = vpop.permute.xlu0 %34
  %v37 = vlaneseq
  %v38 = vshrl.u32 %v37, 7
  %v39 = vsub.s32 2, %v38
  %v40 = vrot.slane %v12, %v39
  %v41 = vmul.f32 %v35, %v40
  %v42 = vadd.f32 %v32, %v41
  %43 = vst [vmem:[%s2] sm:$0x3f] %v42
  // Predicated region
  $region10: #{pod_deeponet2_forward.1} parent=0 // pred_check
    _
  $region11: #{pod_deeponet2_forward.1} parent=0 // pred_check_branch
    %45 = sbr.rel (0) target = $region13
  $region12: #{pod_deeponet2_forward.1} parent=0 // pred_region
    _
  $region13: #{pod_deeponet2_forward.1} parent=0 // pred_fallthru
    _
  // Predicated region
  $region14: #{pod_deeponet2_forward.1} parent=0 // pred_check
    _
  $region15: #{pod_deeponet2_forward.1} parent=0 // pred_check_branch
    %47 = sbr.rel (0) target = $region17
  $region16: #{pod_deeponet2_forward.1} parent=0 // pred_region
    _
  $region17: #{pod_deeponet2_forward.1} parent=0 // pred_fallthru
    _

</llo_original>
